<compile_context>
chip_gen: v7x
topology: tpu7x:2x2x1
jax: 0.10.0
libtpu: 0.0.40
codegen_flags: <defaults>
</compile_context>

<pallas_src>
import functools
import math

import jax
import jax.numpy as jnp
from jax.experimental import pallas as pl
from jax.experimental.pallas import tpu as pltpu


def _round_up(x, m):
    return ((x + m - 1) // m) * m


def _vmem_cap_bytes():
    try:
        return int(pltpu.get_tpu_info().vmem_capacity_bytes)
    except Exception:
        return 64 * 2**20  # conservative: v7x per-TensorCore VMEM


def _vmem_limit(est_bytes):
    cap = int(0.70 * _vmem_cap_bytes())
    want = max(2 * int(est_bytes) + (8 << 20), 32 << 20)  # headroom for Mosaic scratch
    # Never return a value below the actual block-buffer requirement.
    return max(min(want, cap), int(est_bytes) + (2 << 20))


def _pick_tile(total, candidates):
    for c in candidates:
        if total % c == 0:
            return c
    return 128  # padded dims are always multiples of 128


def _row_tile_candidates():
    # 1024-row tiles pay off on 128 MiB-VMEM parts (v5e/v6e); keep a 512
    # ceiling where VMEM is 64 MiB per TensorCore (v7x).
    if _vmem_cap_bytes() > 96 * 2**20:
        return (1024, 512, 256, 128)
    return (512, 256, 128)


# --------------------------------------------------------------------------
# Fused kernel: output tile = adj_tile @ (x_tile @ W_slice), accumulated
# over the N (neighbour) contraction axis k.
# --------------------------------------------------------------------------
def _fused_kernel(adj_ref, x_ref, w_ref, out_ref, acc_ref, *, tk, x_resident):
    # adj_ref: (tm, tk)
    # x_ref:   (N_p, F_in_p) if x_resident else (tk, F_in_p)
    # w_ref:   (F_in_p, tf)   -- resident across the k loop
    # out_ref: (tm, tf), acc_ref: (tm, tf) f32 scratch
    k = pl.program_id(3)

    @pl.when(k == 0)
    def _():
        acc_ref[...] = jnp.zeros_like(acc_ref)

    if x_resident:
        start = pl.multiple_of(k * tk, 128)
        x_blk = x_ref[pl.ds(start, tk), :]
    else:
        x_blk = x_ref[...]

    # Stage 1 (fused): support tile for this k-slice of nodes.
    sup = jnp.dot(x_blk, w_ref[...],
                  preferred_element_type=jnp.float32).astype(adj_ref.dtype)
    # Stage 2: aggregate neighbours with the adjacency tile.
    acc_ref[...] += jnp.dot(adj_ref[...], sup,
                            preferred_element_type=jnp.float32)

    @pl.when(k == pl.num_programs(3) - 1)
    def _():
        out_ref[...] = acc_ref[...].astype(out_ref.dtype)


def _fused_gcn(adj_p, x_p, w_p, out_dtype):
    B, N_p, _ = adj_p.shape
    F_in_p, F_out_p = w_p.shape
    itemsize = jnp.dtype(x_p.dtype).itemsize
    vmem_cap = _vmem_cap_bytes()

    row_cands = _row_tile_candidates()
    tm = _pick_tile(N_p, row_cands)
    tk = _pick_tile(N_p, row_cands)
    # F_out tile: 256 fills v6e/v7x MXU columns when F_out is genuinely large;
    # a small F_out stays at 128 (never pad further on a mem-bound kernel).
    tf = _pick_tile(F_out_p, (256, 128))

    # v7x has 2 TensorCores: make sure the parallel grid extent is >= 2.
    while B * (N_p // tm) * (F_out_p // tf) < 2 and tm > 128:
        tm //= 2

    # Keep the whole per-batch x slab resident when it fits comfortably so x
    # is DMA'd once per batch instead of once per row tile.
    x_resident = 2 * N_p * F_in_p * itemsize <= vmem_cap // 4
    x_bytes = 2 * N_p * F_in_p if x_resident else 2 * tk * F_in_p

    est = itemsize * (
        2 * tm * tk            # adj tile, double-buffered (binding HBM path)
        + x_bytes              # x slab (resident) or tile (double-buffered)
        + 2 * F_in_p * tf      # weight slice
        + 2 * tm * tf          # output tile, double-buffered
    ) + 4 * tm * tf            # f32 accumulator scratch

    if x_resident:
        x_spec = pl.BlockSpec((None, N_p, F_in_p), lambda b, i, j, k: (b, 0, 0))
    else:
        x_spec = pl.BlockSpec((None, tk, F_in_p), lambda b, i, j, k: (b, k, 0))

    grid_spec = pltpu.PrefetchScalarGridSpec(
        num_scalar_prefetch=0,
        grid=(B, N_p // tm, F_out_p // tf, N_p // tk),
        in_specs=[
            # adj streams along k; if a trace shows exposed DMA here, sweep
            # pipeline_mode=pl.Buffered(3) (not added blind: v7x VMEM is tight).
            pl.BlockSpec((None, tm, tk), lambda b, i, j, k: (b, i, k)),
            x_spec,
            pl.BlockSpec((F_in_p, tf), lambda b, i, j, k: (0, j)),
        ],
        out_specs=pl.BlockSpec((None, tm, tf), lambda b, i, j, k: (b, i, j)),
        scratch_shapes=[pltpu.VMEM((tm, tf), jnp.float32)],
    )

    return pl.pallas_call(
        functools.partial(_fused_kernel, tk=tk, x_resident=x_resident),
        out_shape=jax.ShapeDtypeStruct((B, N_p, F_out_p), out_dtype),
        grid_spec=grid_spec,
        compiler_params=pltpu.CompilerParams(
            dimension_semantics=("parallel", "parallel", "parallel", "arbitrary"),
            vmem_limit_bytes=_vmem_limit(est),
        ),
    )(adj_p, x_p, w_p)


# --------------------------------------------------------------------------
# Fallback two-stage path (only used when the weight is too large to keep a
# slice resident in the fused kernel).  Every block is bounded.
# --------------------------------------------------------------------------
def _support_kernel(x_ref, w_ref, out_ref, acc_ref):
    c = pl.program_id(2)  # F_in contraction axis

    @pl.when(c == 0)
    def _():
        acc_ref[...] = jnp.zeros_like(acc_ref)

    acc_ref[...] += jnp.dot(x_ref[...], w_ref[...],
                            preferred_element_type=jnp.float32)

    @pl.when(c == pl.num_programs(2) - 1)
    def _():
        out_ref[...] = acc_ref[...].astype(out_ref.dtype)


def _compute_support(x_flat, w_p):
    R, F_in_p = x_flat.shape
    F_out_p = w_p.shape[1]
    itemsize = jnp.dtype(x_flat.dtype).itemsize

    tr = _pick_tile(R, _row_tile_candidates())
    tf = _pick_tile(F_out_p, (256, 128))
    tc = _pick_tile(F_in_p, (512, 256, 128))

    est = itemsize * (2 * tr * tc + 2 * tc * tf + 2 * tr * tf) + 4 * tr * tf

    grid_spec = pltpu.PrefetchScalarGridSpec(
        num_scalar_prefetch=0,
        grid=(R // tr, F_out_p // tf, F_in_p // tc),
        in_specs=[
            pl.BlockSpec((tr, tc), lambda r, j, c: (r, c)),
            pl.BlockSpec((tc, tf), lambda r, j, c: (c, j)),
        ],
        out_specs=pl.BlockSpec((tr, tf), lambda r, j, c: (r, j)),
        scratch_shapes=[pltpu.VMEM((tr, tf), jnp.float32)],
    )

    return pl.pallas_call(
        _support_kernel,
        out_shape=jax.ShapeDtypeStruct((R, F_out_p), x_flat.dtype),
        grid_spec=grid_spec,
        compiler_params=pltpu.CompilerParams(
            dimension_semantics=("parallel", "parallel", "arbitrary"),
            vmem_limit_bytes=_vmem_limit(est),
        ),
    )(x_flat, w_p)


def _aggregate_kernel(adj_ref, sup_ref, out_ref, acc_ref):
    k = pl.program_id(3)

    @pl.when(k == 0)
    def _():
        acc_ref[...] = jnp.zeros_like(acc_ref)

    acc_ref[...] += jnp.dot(adj_ref[...], sup_ref[...],
                            preferred_element_type=jnp.float32)

    @pl.when(k == pl.num_programs(3) - 1)
    def _():
        out_ref[...] = acc_ref[...].astype(out_ref.dtype)


def _aggregate(adj_p, support, out_dtype):
    B, N_p, _ = adj_p.shape
    F_out_p = support.shape[-1]
    itemsize = jnp.dtype(support.dtype).itemsize

    row_cands = _row_tile_candidates()
    tm = _pick_tile(N_p, row_cands)
    tk = _pick_tile(N_p, row_cands)
    tf = _pick_tile(F_out_p, (256, 128))

    while B * (N_p // tm) * (F_out_p // tf) < 2 and tm > 128:
        tm //= 2

    est = itemsize * (2 * tm * tk + 2 * tk * tf + 2 * tm * tf) + 4 * tm * tf

    grid_spec = pltpu.PrefetchScalarGridSpec(
        num_scalar_prefetch=0,
        grid=(B, N_p // tm, F_out_p // tf, N_p // tk),
        in_specs=[
            pl.BlockSpec((None, tm, tk), lambda b, i, j, k: (b, i, k)),
            pl.BlockSpec((None, tk, tf), lambda b, i, j, k: (b, k, j)),
        ],
        out_specs=pl.BlockSpec((None, tm, tf), lambda b, i, j, k: (b, i, j)),
        scratch_shapes=[pltpu.VMEM((tm, tf), jnp.float32)],
    )

    return pl.pallas_call(
        _aggregate_kernel,
        out_shape=jax.ShapeDtypeStruct((B, N_p, F_out_p), out_dtype),
        grid_spec=grid_spec,
        compiler_params=pltpu.CompilerParams(
            dimension_semantics=("parallel", "parallel", "parallel", "arbitrary"),
            vmem_limit_bytes=_vmem_limit(est),
        ),
    )(adj_p, support)


# --------------------------------------------------------------------------
# Public wrapper: matches GraphConvolution.forward(x, adj) semantics.
# --------------------------------------------------------------------------
def graph_convolution(x, adj, weight, *, compute_dtype=jnp.bfloat16):
    """output = adj @ (x @ weight).

    Operands are cast once to `compute_dtype` (bf16 by default — a documented,
    deliberate downcast of the row-normalized adjacency; all matmuls accumulate
    in f32).  The result is returned in x.dtype.
    """
    B, N, F_in = x.shape
    F_out = weight.shape[1]
    assert adj.shape == (B, N, N)
    assert weight.shape[0] == F_in
    out_dtype = x.dtype

    N_p = _round_up(N, 128)
    F_in_p = _round_up(F_in, 128)
    F_out_p = _round_up(F_out, 128)

    def _prep(a, pads):
        # Single materialization pass: cast only if needed, pad only if needed.
        # Zero padding is exact for both matmuls and is sliced off at the end.
        if a.dtype != compute_dtype:
            a = a.astype(compute_dtype)
        if any(hi for _, hi in pads):
            a = jnp.pad(a, pads)
        return a

    x_p = _prep(x, ((0, 0), (0, N_p - N), (0, F_in_p - F_in)))
    adj_p = _prep(adj, ((0, 0), (0, N_p - N), (0, N_p - N)))
    w_p = _prep(weight, ((0, F_in_p - F_in), (0, F_out_p - F_out)))

    itemsize = jnp.dtype(compute_dtype).itemsize
    # Fused path keeps an (F_in_p, <=256) weight slice resident plus a
    # double-buffered (<=max_row_tile, F_in_p) x tile; use it whenever that
    # fits comfortably (typical GCN: F_in, F_out << N).
    fused_ok = (
        F_in_p * (256 + 2 * max(_row_tile_candidates())) * itemsize
        <= _vmem_cap_bytes() // 2
    )

    if fused_ok:
        out_p = _fused_gcn(adj_p, x_p, w_p, out_dtype)
    else:
        support = _compute_support(x_p.reshape(B * N_p, F_in_p), w_p)
        out_p = _aggregate(adj_p, support.reshape(B, N_p, F_out_p), out_dtype)

    return out_p[:, :N, :F_out]


if __name__ == "__main__":
    # Small, deterministic example shapes consistent with the module.
    B, N = 2, 16          # batch, number of graph nodes
    F_in, F_out = 32, 16  # in_features, out_features

    key = jax.random.PRNGKey(0)
    k_x, k_adj, k_w, k_b = jax.random.split(key, 4)

    x = jax.random.normal(k_x, (B, N, F_in), dtype=jnp.float32)
    adj_raw = jax.random.uniform(k_adj, (B, N, N), dtype=jnp.float32)
    adj = adj_raw / jnp.sum(adj_raw, axis=-1, keepdims=True)  # row-normalized adjacency

    # Parameters: uniform(-stdv, stdv) with stdv = 1/sqrt(out_features),
    # mirroring reset_parameters().
    stdv = 1.0 / math.sqrt(F_out)
    weight = jax.random.uniform(
        k_w, (F_in, F_out), minval=-stdv, maxval=stdv, dtype=jnp.float32
    )
    bias = jax.random.uniform(
        k_b, (F_out,), minval=-stdv, maxval=stdv, dtype=jnp.float32
    )  # defined by the module but unused in forward()

    out = jax.block_until_ready(graph_convolution(x, adj, weight))

    # Reference check in plain JAX (same semantics as the torch.matmul chain).
    ref = jnp.einsum("bnm,bmf->bnf", adj, jnp.einsum("bni,io->bno", x, weight))
    assert out.shape == (B, N, F_out)
    assert out.dtype == x.dtype
    # bf16 operands with f32 accumulation -> a few 1e-3 of absolute error here.
    assert jnp.allclose(out, ref, atol=2e-2, rtol=2e-2), float(
        jnp.max(jnp.abs(out - ref))
    )

    print("KERNEL_OK")
</pallas_src>

<mosaic_0001>
module attributes {stable_mosaic.version = 11 : i64} {
  func.func @_fused_kernel(%arg0: i32, %arg1: i32, %arg2: i32, %arg3: i32, %arg4: memref<1x128x128xbf16, #tpu.memory_space<vmem>>, %arg5: memref<1x128x128xbf16, #tpu.memory_space<vmem>>, %arg6: memref<128x128xbf16, #tpu.memory_space<vmem>>, %arg7: memref<1x128x128xf32, #tpu.memory_space<vmem>>, %arg8: memref<128x128xf32, #tpu.memory_space<vmem>>) attributes {dimension_semantics = [#tpu.dimension_semantics<parallel>, #tpu.dimension_semantics<parallel>, #tpu.dimension_semantics<parallel>, #tpu.dimension_semantics<arbitrary>], iteration_bounds = array<i64: 2, 1, 1, 1>, scalar_prefetch = 0 : i64, scratch_operands = 1 : i64, tpu.core_type = #tpu.core_type<tc>, window_params = [{transform_indices = @transform_0, window_bounds = array<i64: 1, 128, 128>}, {transform_indices = @transform_1, window_bounds = array<i64: 1, 128, 128>}, {transform_indices = @transform_2, window_bounds = array<i64: 128, 128>}, {transform_indices = @transform_3, window_bounds = array<i64: 1, 128, 128>}]} {
    %c0_i32 = arith.constant 0 : i32
    %0 = arith.cmpi eq, %arg3, %c0_i32 : i32
    %1 = arith.extui %0 : i1 to i32
    %c0_i32_0 = arith.constant 0 : i32
    %2 = arith.cmpi ne, %1, %c0_i32_0 : i32
    scf.if %2 {
      %cst_14 = arith.constant 0.000000e+00 : f32
      %20 = vector.broadcast %cst_14 : f32 to vector<128x128xf32>
      %c0_15 = arith.constant 0 : index
      %c0_16 = arith.constant 0 : index
      %21 = vector.load %arg8[%c0_15, %c0_16] : memref<128x128xf32, #tpu.memory_space<vmem>>, vector<128x128xf32>
      tpu.vector_store %arg8[%c0_15, %c0_16], %20 {strides = array<i32>} : memref<128x128xf32, #tpu.memory_space<vmem>>, vector<128x128xf32>,
    } else {
    }
    %c128_i32 = arith.constant 128 : i32
    %3 = arith.muli %arg3, %c128_i32 : i32
    %4 = tpu.assume_multiple %3, 128 : i32
    %c0 = arith.constant 0 : index
    %5 = arith.index_cast %4 : i32 to index
    %c0_1 = arith.constant 0 : index
    %6 = vector.load %arg5[%c0, %5, %c0_1] : memref<1x128x128xbf16, #tpu.memory_space<vmem>>, vector<1x128x128xbf16>
    %7 = vector.shape_cast %6 : vector<1x128x128xbf16> to vector<128x128xbf16>
    %c0_2 = arith.constant 0 : index
    %c0_3 = arith.constant 0 : index
    %8 = vector.load %arg6[%c0_2, %c0_3] : memref<128x128xbf16, #tpu.memory_space<vmem>>, vector<128x128xbf16>
    %cst = arith.constant dense<0.000000e+00> : vector<128x128xf32>
    %9 = tpu.matmul %7, %8, %cst {dimension_numbers = #tpu.dot_dimension_numbers<[1], [0], [0], [1], [0, 0, 1, 1], [], []>} : vector<128x128xbf16>, vector<128x128xbf16>, vector<128x128xf32> -> vector<128x128xf32>
    %10 = arith.truncf %9 : vector<128x128xf32> to vector<128x128xbf16>
    %c0_4 = arith.constant 0 : index
    %c0_5 = arith.constant 0 : index
    %11 = vector.load %arg8[%c0_4, %c0_5] : memref<128x128xf32, #tpu.memory_space<vmem>>, vector<128x128xf32>
    %c0_6 = arith.constant 0 : index
    %c0_7 = arith.constant 0 : index
    %c0_8 = arith.constant 0 : index
    %12 = vector.load %arg4[%c0_6, %c0_7, %c0_8] : memref<1x128x128xbf16, #tpu.memory_space<vmem>>, vector<1x128x128xbf16>
    %13 = vector.shape_cast %12 : vector<1x128x128xbf16> to vector<128x128xbf16>
    %cst_9 = arith.constant dense<0.000000e+00> : vector<128x128xf32>
    %14 = tpu.matmul %13, %10, %cst_9 {dimension_numbers = #tpu.dot_dimension_numbers<[1], [0], [0], [1], [0, 0, 1, 1], [], []>} : vector<128x128xbf16>, vector<128x128xbf16>, vector<128x128xf32> -> vector<128x128xf32>
    %15 = arith.addf %11, %14 : vector<128x128xf32>
    %c0_10 = arith.constant 0 : index
    %c0_11 = arith.constant 0 : index
    %16 = vector.load %arg8[%c0_10, %c0_11] : memref<128x128xf32, #tpu.memory_space<vmem>>, vector<128x128xf32>
    tpu.vector_store %arg8[%c0_10, %c0_11], %15 {strides = array<i32>} : memref<128x128xf32, #tpu.memory_space<vmem>>, vector<128x128xf32>,
    %c0_i32_12 = arith.constant 0 : i32
    %17 = arith.cmpi eq, %arg3, %c0_i32_12 : i32
    %18 = arith.extui %17 : i1 to i32
    %c0_i32_13 = arith.constant 0 : i32
    %19 = arith.cmpi ne, %18, %c0_i32_13 : i32
    scf.if %19 {
      %c0_14 = arith.constant 0 : index
      %c0_15 = arith.constant 0 : index
      %20 = vector.load %arg8[%c0_14, %c0_15] : memref<128x128xf32, #tpu.memory_space<vmem>>, vector<128x128xf32>
      %c0_16 = arith.constant 0 : index
      %c0_17 = arith.constant 0 : index
      %c0_18 = arith.constant 0 : index
      %21 = vector.load %arg7[%c0_16, %c0_17, %c0_18] : memref<1x128x128xf32, #tpu.memory_space<vmem>>, vector<1x128x128xf32>
      %22 = vector.shape_cast %21 : vector<1x128x128xf32> to vector<128x128xf32>
      %23 = vector.shape_cast %20 : vector<128x128xf32> to vector<1x128x128xf32>
      tpu.vector_store %arg7[%c0_16, %c0_17, %c0_18], %23 {strides = array<i32>} : memref<1x128x128xf32, #tpu.memory_space<vmem>>, vector<1x128x128xf32>,
    } else {
    }
    return
  }
  func.func @transform_0(%arg0: i32, %arg1: i32, %arg2: i32, %arg3: i32) -> (i32, i32, i32) {
    %c0_i32 = arith.constant 0 : i32
    return %arg0, %arg1, %arg3 : i32, i32, i32
  }
  func.func @transform_1(%arg0: i32, %arg1: i32, %arg2: i32, %arg3: i32) -> (i32, i32, i32) {
    %c0_i32 = arith.constant 0 : i32
    %c0_i32_0 = arith.constant 0 : i32
    %c0_i32_1 = arith.constant 0 : i32
    return %arg0, %c0_i32, %c0_i32_0 : i32, i32, i32
  }
  func.func @transform_2(%arg0: i32, %arg1: i32, %arg2: i32, %arg3: i32) -> (i32, i32) {
    %c0_i32 = arith.constant 0 : i32
    %c0_i32_0 = arith.constant 0 : i32
    return %c0_i32, %arg2 : i32, i32
  }
  func.func @transform_3(%arg0: i32, %arg1: i32, %arg2: i32, %arg3: i32) -> (i32, i32, i32) {
    %c0_i32 = arith.constant 0 : i32
    return %arg0, %arg1, %arg2 : i32, i32, i32
  }
}

</mosaic_0001>

<llo_original>
// kernel: tpu_custom_call.1
$region0: #{tpu_custom_call.1}
  #allocation0 [shape = 'u32[]', space=smem, size = 0x4, offset = 0x4, fixed_abs, tag = 'smem constant byte address 0x4 - core index']
  #allocation1 [shape = 'u32[144,128]{1,0:T(1,128)}', space=vmem, size = 0x12000, scoped, tag = 'internal scratch']
  #allocation2 [shape = 'f32[128,128]{1,0:T(8,128)}', space=vmem, size = 0x10000, scoped, tag = 'scratch operand']
  %s0 = inlined_call_operand.hbm [shape: bf16[2,128,128], index: 0, kind: input, shape index: {}]
  %s1 = inlined_call_operand.hbm [shape: bf16[2,128,128], index: 1, kind: input, shape index: {}]
  %s2 = inlined_call_operand.hbm [shape: bf16[128,128], index: 2, kind: input, shape index: {}]
  %s3 = inlined_call_operand.hbm [shape: f32[2,128,128], index: 3, kind: output, shape index: {}]
  %s4 = sld [smem:[#allocation0]]
  $region65: #{tpu_custom_call.1} parent=0
    _
  %s6 = ssub.s32 1, %s4
  %s7 = scalar_select 0, %s6, %s4
  $region1: #{tpu_custom_call.1} parent=0
    #allocation3 [shape = 'u8[65536]{0}', space=vmem, size = 0x10000, scoped, tag = 'input window, operand 0']
    #allocation4 [shape = 's32[2]{0}', space=sflag, size = 0x8, scoped, tag = 'scoped memory for tpu_custom_call.1']
    #allocation5 [shape = 's32[2]{0}', space=sflag, size = 0x8, scoped, tag = 'scoped memory for tpu_custom_call.1']
    #allocation6 [shape = 'u8[65536]{0}', space=vmem, size = 0x10000, scoped, tag = 'input window, operand 1']
    #allocation7 [shape = 's32[2]{0}', space=sflag, size = 0x8, scoped, tag = 'scoped memory for tpu_custom_call.1']
    #allocation8 [shape = 'u8[32768]{0}', space=vmem, size = 0x8000, scoped, tag = 'input window, operand 2, single buffered']
    #allocation9 [shape = 'u8[131072]{0}', space=vmem, size = 0x20000, scoped, tag = 'output window, operand 0']
    %8 = vsyncpa [#allocation4], 0
    %s9 = scalar_lea.sflag [#allocation4], 1
    %10 = vsyncpa %s9, 0
    %11 = vsyncpa [#allocation7], 0
    %s12 = scalar_lea.sflag [#allocation7], 1
    %13 = vsyncpa %s12, 0
    %14 = vsyncpa [#allocation5], 0
    %s15 = scalar_lea.sflag [#allocation5], 1
    %16 = vsyncpa %s15, 0
    loop: start=0, step=1, limit=4
    $region2: #{tpu_custom_call.1} parent=1 // loop_pre_header
      _
    $region3: #{tpu_custom_call.1} parent=1 // loop_header
      %s18 = sphi 0, %s22
      %p19 = scmp.ge.s32.totalorder %s18, 4
      %s25 = sphi 0, %s51
      %s26 = sphi 0, %s47
      %s27 = sphi 0, %s43
      %s28 = sphi 0, %s39
      %s29 = sphi 0, %s25
      %s30 = sphi 0, %s26
      %s31 = sphi 0, %s27
      %s32 = sphi 0, %s28
      %s33 = sphi 0, %s29
      %s34 = sphi 0, %s30
      %s35 = sphi 0, %s31
      %s36 = sphi 0, %s32
      %s58 = sphi 0, %s60
      %s61 = sphi 0, %s58
      %s62 = sphi 0, %s61
      %s78 = sphi 0, %s62
      %s84 = sphi 0, %s86
      %s87 = sphi 0, %s84
      %s88 = sphi 0, %s87
      %s104 = sphi 0, %s88
      %s110 = sphi 0, %s112
      %s113 = sphi 0, %s110
      %s114 = sphi 0, %s113
      %s130 = sphi 0, %s114
      %s140 = sphi 0, %s142
      %s143 = sphi 0, %s140
      %s144 = sphi 0, %s143
      %s160 = sphi 0, %s144
    $region4: #{tpu_custom_call.1} parent=1 // loop_header_branch
      %21 = sbr.rel (%p19) target = $region8
    $region5: #{tpu_custom_call.1} parent=1 // loop_body
      %s23 = ssub.s32 %s18, 1
      %s24 = ssub.s32 %s18, 2
      %s37 = sadd.s32 1, %s28
      %p38 = scmp.ge.s32.totalorder %s37, 1
      %s39 = scalar_select %p38, 0, %s37
      %s40 = sadd.s32 1, %s27
      %s41 = scalar_select %p38, %s40, %s27
      %p42 = scmp.ge.s32.totalorder %s41, 1
      %s43 = scalar_select %p42, 0, %s41
      %s44 = sadd.s32 1, %s26
      %s45 = scalar_select %p42, %s44, %s26
      %p46 = scmp.ge.s32.totalorder %s45, 1
      %s47 = scalar_select %p46, 0, %s45
      %s48 = sadd.s32 1, %s25
      %s49 = scalar_select %p46, %s48, %s25
      %p50 = scmp.ge.s32.totalorder %s49, 2
      %s51 = scalar_select %p50, 0, %s49
      %s52 = ssub.s32 %s25, %s51
      %s53 = ssub.s32 %s26, %s47
      %s54 = sor.u32 %s52, %s53
      %s55 = ssub.s32 %s28, %s39
      %s56 = sor.u32 %s54, %s55
      %p57 = scmp.eq.s32.totalorder %s56, 0
      %s59 = sadd.s32 %s58, 1
      %s60 = scalar_select %p57, %s58, %s59
      %p63 = pneg %p57
      %p64 = scmp.eq.s32.totalorder %s18, 1
      %p65 = por %p63, %p64
      %p66 = scmp.ne.s32.totalorder %s58, %s61
      %p67 = scmp.eq.s32.totalorder %s18, 0
      %p68 = por %p66, %p67
      %p69 = scmp.ne.s32.totalorder %s58, %s61
      %p70 = scmp.eq.s32.totalorder %s23, 1
      %p71 = por %p69, %p70
      %p72 = scmp.ne.s32.totalorder %s61, %s62
      %p73 = scmp.eq.s32.totalorder %s23, 0
      %p74 = por %p72, %p73
      %p75 = scmp.ne.s32.totalorder %s61, %s62
      %p76 = scmp.eq.s32.totalorder %s24, 1
      %p77 = por %p75, %p76
      %p79 = scmp.ne.s32.totalorder %s62, %s78
      %p80 = scmp.eq.s32.totalorder %s24, 0
      %p81 = por %p79, %p80
      %s82 = ssub.s32 %s25, %s51
      %p83 = scmp.eq.s32.totalorder %s82, 0
      %s85 = sadd.s32 %s84, 1
      %s86 = scalar_select %p83, %s84, %s85
      %p89 = pneg %p83
      %p90 = scmp.eq.s32.totalorder %s18, 1
      %p91 = por %p89, %p90
      %p92 = scmp.ne.s32.totalorder %s84, %s87
      %p93 = scmp.eq.s32.totalorder %s18, 0
      %p94 = por %p92, %p93
      %p95 = scmp.ne.s32.totalorder %s84, %s87
      %p96 = scmp.eq.s32.totalorder %s23, 1
      %p97 = por %p95, %p96
      %p98 = scmp.ne.s32.totalorder %s87, %s88
      %p99 = scmp.eq.s32.totalorder %s23, 0
      %p100 = por %p98, %p99
      %p101 = scmp.ne.s32.totalorder %s87, %s88
      %p102 = scmp.eq.s32.totalorder %s24, 1
      %p103 = por %p101, %p102
      %p105 = scmp.ne.s32.totalorder %s88, %s104
      %p106 = scmp.eq.s32.totalorder %s24, 0
      %p107 = por %p105, %p106
      %s108 = ssub.s32 %s27, %s43
      %p109 = scmp.eq.s32.totalorder %s108, 0
      %s111 = sadd.s32 %s110, 1
      %s112 = scalar_select %p109, %s110, %s111
      %p115 = pneg %p109
      %p116 = scmp.eq.s32.totalorder %s18, 1
      %p117 = por %p115, %p116
      %p118 = scmp.ne.s32.totalorder %s110, %s113
      %p119 = scmp.eq.s32.totalorder %s18, 0
      %p120 = por %p118, %p119
      %p121 = scmp.ne.s32.totalorder %s110, %s113
      %p122 = scmp.eq.s32.totalorder %s23, 1
      %p123 = por %p121, %p122
      %p124 = scmp.ne.s32.totalorder %s113, %s114
      %p125 = scmp.eq.s32.totalorder %s23, 0
      %p126 = por %p124, %p125
      %p127 = scmp.ne.s32.totalorder %s113, %s114
      %p128 = scmp.eq.s32.totalorder %s24, 1
      %p129 = por %p127, %p128
      %p131 = scmp.ne.s32.totalorder %s114, %s130
      %p132 = scmp.eq.s32.totalorder %s24, 0
      %p133 = por %p131, %p132
      %s134 = ssub.s32 %s25, %s51
      %s135 = ssub.s32 %s26, %s47
      %s136 = sor.u32 %s134, %s135
      %s137 = ssub.s32 %s27, %s43
      %s138 = sor.u32 %s136, %s137
      %p139 = scmp.eq.s32.totalorder %s138, 0
      %s141 = sadd.s32 %s140, 1
      %s142 = scalar_select %p139, %s140, %s141
      %p145 = pneg %p139
      %p146 = scmp.eq.s32.totalorder %s18, 1
      %p147 = por %p145, %p146
      %p148 = scmp.ne.s32.totalorder %s140, %s143
      %p149 = scmp.eq.s32.totalorder %s18, 0
      %p150 = por %p148, %p149
      %p151 = scmp.ne.s32.totalorder %s140, %s143
      %p152 = scmp.eq.s32.totalorder %s23, 1
      %p153 = por %p151, %p152
      %p154 = scmp.ne.s32.totalorder %s143, %s144
      %p155 = scmp.eq.s32.totalorder %s23, 0
      %p156 = por %p154, %p155
      %p157 = scmp.ne.s32.totalorder %s143, %s144
      %p158 = scmp.eq.s32.totalorder %s24, 1
      %p159 = por %p157, %p158
      %p161 = scmp.ne.s32.totalorder %s144, %s160
      %p162 = scmp.eq.s32.totalorder %s24, 0
      %p163 = por %p161, %p162
      %p164 = scmp.le.s32.totalorder 1, %s18
      %p165 = scmp.lt.s32.totalorder %s18, 3
      %p166 = pnand %p164, %p165
      %p167 = pneg %p166
      // Predicated region
      $region9: #{tpu_custom_call.1} parent=5 // pred_check
        _
      $region10: #{tpu_custom_call.1} parent=5 // pred_check_branch
        %169 = sbr.rel (%p166) target = $region12
      $region11: #{tpu_custom_call.1} parent=5 // pred_region
        %s170 = ssub.s32 %s18, 1
        // Predicated region
        $region13: #{tpu_custom_call.1} parent=11 // pred_check
          %p171 = pneg %p126
        $region14: #{tpu_custom_call.1} parent=11 // pred_check_branch
          %173 = sbr.rel (%p171) target = $region16
        $region15: #{tpu_custom_call.1} parent=11 // pred_region
          %s175 = ssub.s32 1024, 1024
          %176 = vsyncadd [#allocation7], %s175
          %s177 = smul.addr %s31, 64
          %s178 = scalar_lea.hbm %s2, %s177
          %s179 = sshll.u32 [#allocation8], 4
          %s180 = int_to_ptr.vmem [resolvable:$true] %s179
          %185 = dma.hbm_to_vmem [thread:$0]  %s178, 1024, %s180, [#allocation7], 64, 64, 4
        $region16: #{tpu_custom_call.1} parent=11 // pred_fallthru
          _
      $region12: #{tpu_custom_call.1} parent=5 // pred_fallthru
        _
      %p186 = scmp.lt.s32.totalorder %s18, 2
      // Predicated region
      $region17: #{tpu_custom_call.1} parent=5 // pred_check
        %p187 = pneg %p186
      $region18: #{tpu_custom_call.1} parent=5 // pred_check_branch
        %189 = sbr.rel (%p187) target = $region20
      $region19: #{tpu_custom_call.1} parent=5 // pred_region
        // Predicated region
        $region21: #{tpu_custom_call.1} parent=19 // pred_check
          %p190 = pneg %p68
        $region22: #{tpu_custom_call.1} parent=19 // pred_check_branch
          %192 = sbr.rel (%p190) target = $region24
        $region23: #{tpu_custom_call.1} parent=19 // pred_region
          %s193 = sand.u32 %s58, 1
          %s194 = scalar_lea.sflag [#allocation4], %s193
          %s195 = sand.u32 %s58, 1
          %s196 = smul.addr %s195, 64
          %s197 = scalar_lea.vmem [#allocation3], %s196
          %s198 = smul.u32 16, %s26
          %s200 = ssub.s32 1024, 1024
          %201 = vsyncadd %s194, %s200
          %s202 = sadd.s32 %s28, %s198
          %s203 = smul.addr %s25, 16
          %s204 = sadd.s32 %s202, %s203
          %s205 = smul.addr %s204, 64
          %s206 = scalar_lea.hbm %s0, %s205
          %s207 = sshll.u32 %s197, 4
          %s208 = int_to_ptr.vmem [resolvable:$true] %s207
          %213 = dma.hbm_to_vmem [thread:$0]  %s206, 1024, %s208, %s194, 64, 64, 4
        $region24: #{tpu_custom_call.1} parent=19 // pred_fallthru
          _
        // Predicated region
        $region25: #{tpu_custom_call.1} parent=19 // pred_check
          %p214 = pneg %p94
        $region26: #{tpu_custom_call.1} parent=19 // pred_check_branch
          %216 = sbr.rel (%p214) target = $region28
        $region27: #{tpu_custom_call.1} parent=19 // pred_region
          %s217 = sand.u32 %s18, 1
          %s218 = scalar_lea.sflag [#allocation7], %s217
          %s219 = sand.u32 %s84, 1
          %s220 = smul.addr %s219, 64
          %s221 = scalar_lea.vmem [#allocation6], %s220
          %s223 = ssub.s32 1024, 1024
          %224 = vsyncadd %s218, %s223
          %s225 = smul.addr %s25, 16
          %s226 = smul.addr %s225, 64
          %s227 = scalar_lea.hbm %s1, %s226
          %s228 = sshll.u32 %s221, 4
          %s229 = int_to_ptr.vmem [resolvable:$true] %s228
          %234 = dma.hbm_to_vmem [thread:$0]  %s227, 1024, %s229, %s218, 64, 64, 4
        $region28: #{tpu_custom_call.1} parent=19 // pred_fallthru
          _
      $region20: #{tpu_custom_call.1} parent=5 // pred_fallthru
        _
      %p235 = scmp.le.s32.totalorder 1, %s18
      %p236 = scmp.lt.s32.totalorder %s18, 3
      %p237 = pnand %p235, %p236
      %p238 = pneg %p237
      // Predicated region
      $region29: #{tpu_custom_call.1} parent=5 // pred_check
        _
      $region30: #{tpu_custom_call.1} parent=5 // pred_check_branch
        %240 = sbr.rel (%p237) target = $region32
      $region31: #{tpu_custom_call.1} parent=5 // pred_region
        %s241 = ssub.s32 %s18, 1
        %s242 = sand.u32 %s61, 1
        %s243 = scalar_lea.sflag [#allocation4], %s242
        %s244 = sand.u32 %s61, 1
        %s245 = smul.addr %s244, 64
        %s246 = scalar_lea.vmem [#allocation3], %s245
        // Predicated region
        $region33: #{tpu_custom_call.1} parent=31 // pred_check
          %p247 = pneg %p74
        $region34: #{tpu_custom_call.1} parent=31 // pred_check_branch
          %249 = sbr.rel (%p247) target = $region36
        $region35: #{tpu_custom_call.1} parent=31 // pred_region
          %250 = dma.done %s243, 1024
        $region36: #{tpu_custom_call.1} parent=31 // pred_fallthru
          _
        %s251 = sand.u32 %s23, 1
        %s252 = scalar_lea.sflag [#allocation7], %s251
        %s253 = sand.u32 %s87, 1
        %s254 = smul.addr %s253, 64
        %s255 = scalar_lea.vmem [#allocation6], %s254
        // Predicated region
        $region37: #{tpu_custom_call.1} parent=31 // pred_check
          %p256 = pneg %p100
        $region38: #{tpu_custom_call.1} parent=31 // pred_check_branch
          %258 = sbr.rel (%p256) target = $region40
        $region39: #{tpu_custom_call.1} parent=31 // pred_region
          %259 = dma.done %s252, 1024
        $region40: #{tpu_custom_call.1} parent=31 // pred_fallthru
          _
        // Predicated region
        $region41: #{tpu_custom_call.1} parent=31 // pred_check
          %p260 = pneg %p126
        $region42: #{tpu_custom_call.1} parent=31 // pred_check_branch
          %262 = sbr.rel (%p260) target = $region44
        $region43: #{tpu_custom_call.1} parent=31 // pred_region
          %263 = dma.done [#allocation7], 1024
        $region44: #{tpu_custom_call.1} parent=31 // pred_fallthru
          _
        %s264 = sand.u32 %s61, 1
        %s265 = scalar_lea.sflag [#allocation4], %s264
        %s266 = sand.u32 %s61, 1
        %s267 = smul.addr %s266, 64
        %s268 = scalar_lea.vmem [#allocation3], %s267
        %p269 = pneg %p74
        %p270 = pneg %p71
        %s271 = sand.u32 %s23, 1
        %s272 = scalar_lea.sflag [#allocation7], %s271
        %s273 = sand.u32 %s87, 1
        %s274 = smul.addr %s273, 64
        %s275 = scalar_lea.vmem [#allocation6], %s274
        %p276 = pneg %p100
        %p277 = pneg %p97
        %p278 = pneg %p126
        %p279 = pneg %p123
        %p280 = pneg %p156
        %p281 = pneg %p153
        %s282 = sand.u32 %s143, 1
        %s283 = scalar_lea.sflag [#allocation5], %s282
        %s284 = sand.u32 %s143, 1
        %s285 = smul.addr %s284, 128
        %s286 = scalar_lea.vmem [#allocation9], %s285
        %s287 = smul.u32 16, %s30
        %s288 = smul.u32 16, %s30
        %p290 = scmp.eq.s32.totalorder %s32, 0
        // Predicated region
        $region45: #{tpu_custom_call.1} parent=31 // pred_check
          %p291 = pneg %p290
        $region46: #{tpu_custom_call.1} parent=31 // pred_check_branch
          %293 = sbr.rel (%p291) target = $region48
        $region47: #{tpu_custom_call.1} parent=31 // pred_region
          %294 = vst [vmem:[#allocation2] sm:$0xff] 0.0
          %295 = vst [vmem:[#allocation2 + $0x8] sm:$0xff] 0.0
          %296 = vst [vmem:[#allocation2 + $0x10] sm:$0xff] 0.0
          %297 = vst [vmem:[#allocation2 + $0x18] sm:$0xff] 0.0
          %298 = vst [vmem:[#allocation2 + $0x20] sm:$0xff] 0.0
          %299 = vst [vmem:[#allocation2 + $0x28] sm:$0xff] 0.0
          %300 = vst [vmem:[#allocation2 + $0x30] sm:$0xff] 0.0
          %301 = vst [vmem:[#allocation2 + $0x38] sm:$0xff] 0.0
          %302 = vst [vmem:[#allocation2 + $0x40] sm:$0xff] 0.0
          %303 = vst [vmem:[#allocation2 + $0x48] sm:$0xff] 0.0
          %304 = vst [vmem:[#allocation2 + $0x50] sm:$0xff] 0.0
          %305 = vst [vmem:[#allocation2 + $0x58] sm:$0xff] 0.0
          %306 = vst [vmem:[#allocation2 + $0x60] sm:$0xff] 0.0
          %307 = vst [vmem:[#allocation2 + $0x68] sm:$0xff] 0.0
          %308 = vst [vmem:[#allocation2 + $0x70] sm:$0xff] 0.0
          %309 = vst [vmem:[#allocation2 + $0x78] sm:$0xff] 0.0
        $region48: #{tpu_custom_call.1} parent=31 // pred_fallthru
          _
        %s310 = smul.u32 %s32, 128
        %s311 = sshra.s32 %s310, 3
        %s312 = sand.u32 %s310, 7
        %s313 = smul.addr %s311, 4
        %s314 = scalar_lea.vmem %s255, %s313 [#allocation6]
        %v315 = vld [vmem:[%s314] sm:$0xf]
        %v316 = vld [vmem:[%s314 + $0x4] sm:$0xf]
        %v317 = vld [vmem:[%s314 + $0x8] sm:$0xf]
        %v318 = vld [vmem:[%s314 + $0xc] sm:$0xf]
        %v319 = vld [vmem:[%s314 + $0x10] sm:$0xf]
        %v320 = vld [vmem:[%s314 + $0x14] sm:$0xf]
        %v321 = vld [vmem:[%s314 + $0x18] sm:$0xf]
        %v322 = vld [vmem:[%s314 + $0x1c] sm:$0xf]
        %v323 = vld [vmem:[%s314 + $0x20] sm:$0xf]
        %v324 = vld [vmem:[%s314 + $0x24] sm:$0xf]
        %v325 = vld [vmem:[%s314 + $0x28] sm:$0xf]
        %v326 = vld [vmem:[%s314 + $0x2c] sm:$0xf]
        %v327 = vld [vmem:[%s314 + $0x30] sm:$0xf]
        %v328 = vld [vmem:[%s314 + $0x34] sm:$0xf]
        %v329 = vld [vmem:[%s314 + $0x38] sm:$0xf]
        %v330 = vld [vmem:[%s314 + $0x3c] sm:$0xf]
        %v331 = vld [vmem:[#allocation8] sm:$0xf]
        %v332 = vld [vmem:[#allocation8 + $0x4] sm:$0xf]
        %v333 = vld [vmem:[#allocation8 + $0x8] sm:$0xf]
        %v334 = vld [vmem:[#allocation8 + $0xc] sm:$0xf]
        %v335 = vld [vmem:[#allocation8 + $0x10] sm:$0xf]
        %v336 = vld [vmem:[#allocation8 + $0x14] sm:$0xf]
        %v337 = vld [vmem:[#allocation8 + $0x18] sm:$0xf]
        %v338 = vld [vmem:[#allocation8 + $0x1c] sm:$0xf]
        %v339 = vld [vmem:[#allocation8 + $0x20] sm:$0xf]
        %v340 = vld [vmem:[#allocation8 + $0x24] sm:$0xf]
        %v341 = vld [vmem:[#allocation8 + $0x28] sm:$0xf]
        %v342 = vld [vmem:[#allocation8 + $0x2c] sm:$0xf]
        %v343 = vld [vmem:[#allocation8 + $0x30] sm:$0xf]
        %v344 = vld [vmem:[#allocation8 + $0x34] sm:$0xf]
        %v345 = vld [vmem:[#allocation8 + $0x38] sm:$0xf]
        %v346 = vld [vmem:[#allocation8 + $0x3c] sm:$0xf]
        %v363 = vunpack.c.l.b16 %v315
        %v364 = vunpack.c.l.b16 %v316
        %v365 = vunpack.c.l.b16 %v317
        %v366 = vunpack.c.l.b16 %v318
        %v367 = vunpack.c.l.b16 %v319
        %v368 = vunpack.c.l.b16 %v320
        %v369 = vunpack.c.l.b16 %v321
        %v370 = vunpack.c.l.b16 %v322
        %v371 = vunpack.c.l.b16 %v323
        %v372 = vunpack.c.l.b16 %v324
        %v373 = vunpack.c.l.b16 %v325
        %v374 = vunpack.c.l.b16 %v326
        %v375 = vunpack.c.l.b16 %v327
        %v376 = vunpack.c.l.b16 %v328
        %v377 = vunpack.c.l.b16 %v329
        %v378 = vunpack.c.l.b16 %v330
        %v379 = vpack.c.b16 %v364, %v363
        %v380 = vpack.c.b16 %v366, %v365
        %v381 = vpack.c.b16 %v368, %v367
        %v382 = vpack.c.b16 %v370, %v369
        %v383 = vpack.c.b16 %v372, %v371
        %v384 = vpack.c.b16 %v374, %v373
        %v385 = vpack.c.b16 %v376, %v375
        %v386 = vpack.c.b16 %v378, %v377
        %v411 = vunpack.c.l.b16 %v331
        %v412 = vunpack.c.l.b16 %v332
        %v413 = vunpack.c.l.b16 %v333
        %v414 = vunpack.c.l.b16 %v334
        %v415 = vunpack.c.l.b16 %v335
        %v416 = vunpack.c.l.b16 %v336
        %v417 = vunpack.c.l.b16 %v337
        %v418 = vunpack.c.l.b16 %v338
        %v419 = vunpack.c.l.b16 %v339
        %v420 = vunpack.c.l.b16 %v340
        %v421 = vunpack.c.l.b16 %v341
        %v422 = vunpack.c.l.b16 %v342
        %v423 = vunpack.c.l.b16 %v343
        %v424 = vunpack.c.l.b16 %v344
        %v425 = vunpack.c.l.b16 %v345
        %v426 = vunpack.c.l.b16 %v346
        %v427 = vpack.c.b16 %v412, %v411
        %v428 = vpack.c.b16 %v414, %v413
        %v429 = vpack.c.b16 %v416, %v415
        %v430 = vpack.c.b16 %v418, %v417
        %v431 = vpack.c.b16 %v420, %v419
        %v432 = vpack.c.b16 %v422, %v421
        %v433 = vpack.c.b16 %v424, %v423
        %v434 = vpack.c.b16 %v426, %v425
        %443 = vmatprep.subr.bf16.mxu0 0
        %444 = vmatpush1.bf16.msra.mxu0 %v427
        %445 = vmatprep.subr.bf16.mxu0 0
        %446 = vmatpush1.bf16.msra.mxu0 %v428
        %447 = vmatprep.subr.bf16.mxu0 0
        %448 = vmatpush1.bf16.msra.mxu0 %v429
        %449 = vmatprep.subr.bf16.mxu0 0
        %450 = vmatpush1.bf16.msra.mxu0 %v430
        %451 = vmatprep.subr.bf16.mxu0 0
        %452 = vmatpush1.bf16.msra.mxu0 %v431
        %453 = vmatprep.subr.bf16.mxu0 0
        %454 = vmatpush1.bf16.msra.mxu0 %v432
        %455 = vmatprep.subr.bf16.mxu0 0
        %456 = vmatpush1.bf16.msra.mxu0 %v433
        %457 = vmatprep.subr.bf16.mxu0 0
        %458 = vmatpush1.bf16.msra.mxu0 %v434
        %459 = vmatprep.subr.bf16.mxu0 0
        %460 = vmatpush1.bf16.msra.mxu0 0
        %461 = vmatprep.subr.bf16.mxu0 0
        %462 = vmatpush1.bf16.msra.mxu0 0
        %463 = vmatprep.subr.bf16.mxu0 0
        %464 = vmatpush1.bf16.msra.mxu0 0
        %465 = vmatprep.subr.bf16.mxu0 0
        %466 = vmatpush1.bf16.msra.mxu0 0
        %467 = vmatprep.subr.bf16.mxu0 0
        %468 = vmatpush1.bf16.msra.mxu0 0
        %469 = vmatprep.subr.bf16.mxu0 0
        %470 = vmatpush1.bf16.msra.mxu0 0
        %471 = vmatprep.subr.bf16.mxu0 0
        %472 = vmatpush1.bf16.msra.mxu0 0
        %473 = vmatprep.subr.bf16.mxu0 0
        %474 = vmatpush1.bf16.msra.mxu0 0
        %475 = vmatprep.mubr.bf16.mxu0 0
        %476 = vmatmul.mubr.bf16.gmra.mrb[0].mxu0 %v379
        %v477 = vpop.f32.mrb[0].mxu0
        %v478 = vadd.f32 0.0, %v477
        %v479 = vpop.f32.mrb[0].mxu0
        %v480 = vpop.f32.mrb[0].mxu0
        %v481 = vadd.f32 0.0, %v480
        %v482 = vpop.f32.mrb[0].mxu0
        %483 = vmatprep.mubr.bf16.mxu0 0
        %484 = vmatmul.mubr.bf16.gmra.mrb[0].mxu0 %v380
        %v485 = vpop.f32.mrb[0].mxu0
        %v486 = vadd.f32 0.0, %v485
        %v487 = vpop.f32.mrb[0].mxu0
        %v488 = vpop.f32.mrb[0].mxu0
        %v489 = vadd.f32 0.0, %v488
        %v490 = vpop.f32.mrb[0].mxu0
        %491 = vmatprep.mubr.bf16.mxu0 0
        %492 = vmatmul.mubr.bf16.gmra.mrb[0].mxu0 %v381
        %v493 = vpop.f32.mrb[0].mxu0
        %v494 = vadd.f32 0.0, %v493
        %v495 = vpop.f32.mrb[0].mxu0
        %v496 = vpop.f32.mrb[0].mxu0
        %v497 = vadd.f32 0.0, %v496
        %v498 = vpop.f32.mrb[0].mxu0
        %499 = vmatprep.mubr.bf16.mxu0 0
        %500 = vmatmul.mubr.bf16.gmra.mrb[0].mxu0 %v382
        %v501 = vpop.f32.mrb[0].mxu0
        %v502 = vadd.f32 0.0, %v501
        %v503 = vpop.f32.mrb[0].mxu0
        %v504 = vpop.f32.mrb[0].mxu0
        %v505 = vadd.f32 0.0, %v504
        %v506 = vpop.f32.mrb[0].mxu0
        %507 = vmatprep.mubr.bf16.mxu0 0
        %508 = vmatmul.mubr.bf16.gmra.mrb[0].mxu0 %v383
        %v509 = vpop.f32.mrb[0].mxu0
        %v510 = vadd.f32 0.0, %v509
        %v511 = vpop.f32.mrb[0].mxu0
        %v512 = vpop.f32.mrb[0].mxu0
        %v513 = vadd.f32 0.0, %v512
        %v514 = vpop.f32.mrb[0].mxu0
        %515 = vmatprep.mubr.bf16.mxu0 0
        %516 = vmatmul.mubr.bf16.gmra.mrb[0].mxu0 %v384
        %v517 = vpop.f32.mrb[0].mxu0
        %v518 = vadd.f32 0.0, %v517
        %v519 = vpop.f32.mrb[0].mxu0
        %v520 = vpop.f32.mrb[0].mxu0
        %v521 = vadd.f32 0.0, %v520
        %v522 = vpop.f32.mrb[0].mxu0
        %523 = vmatprep.mubr.bf16.mxu0 0
        %524 = vmatmul.mubr.bf16.gmra.mrb[0].mxu0 %v385
        %v525 = vpop.f32.mrb[0].mxu0
        %v526 = vadd.f32 0.0, %v525
        %v527 = vpop.f32.mrb[0].mxu0
        %v528 = vpop.f32.mrb[0].mxu0
        %v529 = vadd.f32 0.0, %v528
        %v530 = vpop.f32.mrb[0].mxu0
        %531 = vmatprep.mubr.bf16.mxu0 0
        %532 = vmatmul.mubr.bf16.gmra.mrb[0].mxu0 %v386
        %v533 = vpop.f32.mrb[0].mxu0
        %v534 = vadd.f32 0.0, %v533
        %v535 = vpop.f32.mrb[0].mxu0
        %v536 = vpop.f32.mrb[0].mxu0
        %v537 = vadd.f32 0.0, %v536
        %v538 = vpop.f32.mrb[0].mxu0
        %539 = vdwg.mxu0
        %v540 = vpack.c.bf16 %v481, %v478
        %v541 = vpack.c.bf16 %v489, %v486
        %v542 = vpack.c.bf16 %v497, %v494
        %v543 = vpack.c.bf16 %v505, %v502
        %v544 = vpack.c.bf16 %v513, %v510
        %v545 = vpack.c.bf16 %v521, %v518
        %v546 = vpack.c.bf16 %v529, %v526
        %v547 = vpack.c.bf16 %v537, %v534
        %v548 = vld [vmem:[#allocation2] sm:$0xff]
        %v549 = vld [vmem:[#allocation2 + $0x8] sm:$0xff]
        %v550 = vld [vmem:[#allocation2 + $0x10] sm:$0xff]
        %v551 = vld [vmem:[#allocation2 + $0x18] sm:$0xff]
        %v552 = vld [vmem:[#allocation2 + $0x20] sm:$0xff]
        %v553 = vld [vmem:[#allocation2 + $0x28] sm:$0xff]
        %v554 = vld [vmem:[#allocation2 + $0x30] sm:$0xff]
        %v555 = vld [vmem:[#allocation2 + $0x38] sm:$0xff]
        %v556 = vld [vmem:[#allocation2 + $0x40] sm:$0xff]
        %v557 = vld [vmem:[#allocation2 + $0x48] sm:$0xff]
        %v558 = vld [vmem:[#allocation2 + $0x50] sm:$0xff]
        %v559 = vld [vmem:[#allocation2 + $0x58] sm:$0xff]
        %v560 = vld [vmem:[#allocation2 + $0x60] sm:$0xff]
        %v561 = vld [vmem:[#allocation2 + $0x68] sm:$0xff]
        %v562 = vld [vmem:[#allocation2 + $0x70] sm:$0xff]
        %v563 = vld [vmem:[#allocation2 + $0x78] sm:$0xff]
        %v564 = vld [vmem:[%s246] sm:$0xf]
        %v565 = vld [vmem:[%s246 + $0x4] sm:$0xf]
        %v566 = vld [vmem:[%s246 + $0x8] sm:$0xf]
        %v567 = vld [vmem:[%s246 + $0xc] sm:$0xf]
        %v568 = vld [vmem:[%s246 + $0x10] sm:$0xf]
        %v569 = vld [vmem:[%s246 + $0x14] sm:$0xf]
        %v570 = vld [vmem:[%s246 + $0x18] sm:$0xf]
        %v571 = vld [vmem:[%s246 + $0x1c] sm:$0xf]
        %v572 = vld [vmem:[%s246 + $0x20] sm:$0xf]
        %v573 = vld [vmem:[%s246 + $0x24] sm:$0xf]
        %v574 = vld [vmem:[%s246 + $0x28] sm:$0xf]
        %v575 = vld [vmem:[%s246 + $0x2c] sm:$0xf]
        %v576 = vld [vmem:[%s246 + $0x30] sm:$0xf]
        %v577 = vld [vmem:[%s246 + $0x34] sm:$0xf]
        %v578 = vld [vmem:[%s246 + $0x38] sm:$0xf]
        %v579 = vld [vmem:[%s246 + $0x3c] sm:$0xf]
        %v596 = vunpack.c.l.b16 %v564
        %v597 = vunpack.c.l.b16 %v565
        %v598 = vunpack.c.l.b16 %v566
        %v599 = vunpack.c.l.b16 %v567
        %v600 = vunpack.c.l.b16 %v568
        %v601 = vunpack.c.l.b16 %v569
        %v602 = vunpack.c.l.b16 %v570
        %v603 = vunpack.c.l.b16 %v571
        %v604 = vunpack.c.l.b16 %v572
        %v605 = vunpack.c.l.b16 %v573
        %v606 = vunpack.c.l.b16 %v574
        %v607 = vunpack.c.l.b16 %v575
        %v608 = vunpack.c.l.b16 %v576
        %v609 = vunpack.c.l.b16 %v577
        %v610 = vunpack.c.l.b16 %v578
        %v611 = vunpack.c.l.b16 %v579
        %v612 = vpack.c.b16 %v597, %v596
        %v613 = vpack.c.b16 %v599, %v598
        %v614 = vpack.c.b16 %v601, %v600
        %v615 = vpack.c.b16 %v603, %v602
        %v616 = vpack.c.b16 %v605, %v604
        %v617 = vpack.c.b16 %v607, %v606
        %v618 = vpack.c.b16 %v609, %v608
        %v619 = vpack.c.b16 %v611, %v610
        %628 = vmatprep.subr.bf16.mxu0 0
        %629 = vmatpush1.bf16.msra.mxu0 %v540
        %630 = vmatprep.subr.bf16.mxu0 0
        %631 = vmatpush1.bf16.msra.mxu0 %v541
        %632 = vmatprep.subr.bf16.mxu0 0
        %633 = vmatpush1.bf16.msra.mxu0 %v542
        %634 = vmatprep.subr.bf16.mxu0 0
        %635 = vmatpush1.bf16.msra.mxu0 %v543
        %636 = vmatprep.subr.bf16.mxu0 0
        %637 = vmatpush1.bf16.msra.mxu0 %v544
        %638 = vmatprep.subr.bf16.mxu0 0
        %639 = vmatpush1.bf16.msra.mxu0 %v545
        %640 = vmatprep.subr.bf16.mxu0 0
        %641 = vmatpush1.bf16.msra.mxu0 %v546
        %642 = vmatprep.subr.bf16.mxu0 0
        %643 = vmatpush1.bf16.msra.mxu0 %v547
        %644 = vmatprep.subr.bf16.mxu0 0
        %645 = vmatpush1.bf16.msra.mxu0 0
        %646 = vmatprep.subr.bf16.mxu0 0
        %647 = vmatpush1.bf16.msra.mxu0 0
        %648 = vmatprep.subr.bf16.mxu0 0
        %649 = vmatpush1.bf16.msra.mxu0 0
        %650 = vmatprep.subr.bf16.mxu0 0
        %651 = vmatpush1.bf16.msra.mxu0 0
        %652 = vmatprep.subr.bf16.mxu0 0
        %653 = vmatpush1.bf16.msra.mxu0 0
        %654 = vmatprep.subr.bf16.mxu0 0
        %655 = vmatpush1.bf16.msra.mxu0 0
        %656 = vmatprep.subr.bf16.mxu0 0
        %657 = vmatpush1.bf16.msra.mxu0 0
        %658 = vmatprep.subr.bf16.mxu0 0
        %659 = vmatpush1.bf16.msra.mxu0 0
        %660 = vmatprep.mubr.bf16.mxu0 0
        %661 = vmatmul.mubr.bf16.gmra.mrb[0].mxu0 %v612
        %v662 = vpop.f32.mrb[0].mxu0
        %v663 = vadd.f32 0.0, %v662
        %v664 = vpop.f32.mrb[0].mxu0
        %v665 = vpop.f32.mrb[0].mxu0
        %v666 = vadd.f32 0.0, %v665
        %v667 = vpop.f32.mrb[0].mxu0
        %668 = vmatprep.mubr.bf16.mxu0 0
        %669 = vmatmul.mubr.bf16.gmra.mrb[0].mxu0 %v613
        %v670 = vpop.f32.mrb[0].mxu0
        %v671 = vadd.f32 0.0, %v670
        %v672 = vpop.f32.mrb[0].mxu0
        %v673 = vpop.f32.mrb[0].mxu0
        %v674 = vadd.f32 0.0, %v673
        %v675 = vpop.f32.mrb[0].mxu0
        %676 = vmatprep.mubr.bf16.mxu0 0
        %677 = vmatmul.mubr.bf16.gmra.mrb[0].mxu0 %v614
        %v678 = vpop.f32.mrb[0].mxu0
        %v679 = vadd.f32 0.0, %v678
        %v680 = vpop.f32.mrb[0].mxu0
        %v681 = vpop.f32.mrb[0].mxu0
        %v682 = vadd.f32 0.0, %v681
        %v683 = vpop.f32.mrb[0].mxu0
        %684 = vmatprep.mubr.bf16.mxu0 0
        %685 = vmatmul.mubr.bf16.gmra.mrb[0].mxu0 %v615
        %v686 = vpop.f32.mrb[0].mxu0
        %v687 = vadd.f32 0.0, %v686
        %v688 = vpop.f32.mrb[0].mxu0
        %v689 = vpop.f32.mrb[0].mxu0
        %v690 = vadd.f32 0.0, %v689
        %v691 = vpop.f32.mrb[0].mxu0
        %692 = vmatprep.mubr.bf16.mxu0 0
        %693 = vmatmul.mubr.bf16.gmra.mrb[0].mxu0 %v616
        %v694 = vpop.f32.mrb[0].mxu0
        %v695 = vadd.f32 0.0, %v694
        %v696 = vpop.f32.mrb[0].mxu0
        %v697 = vpop.f32.mrb[0].mxu0
        %v698 = vadd.f32 0.0, %v697
        %v699 = vpop.f32.mrb[0].mxu0
        %700 = vmatprep.mubr.bf16.mxu0 0
        %701 = vmatmul.mubr.bf16.gmra.mrb[0].mxu0 %v617
        %v702 = vpop.f32.mrb[0].mxu0
        %v703 = vadd.f32 0.0, %v702
        %v704 = vpop.f32.mrb[0].mxu0
        %v705 = vpop.f32.mrb[0].mxu0
        %v706 = vadd.f32 0.0, %v705
        %v707 = vpop.f32.mrb[0].mxu0
        %708 = vmatprep.mubr.bf16.mxu0 0
        %709 = vmatmul.mubr.bf16.gmra.mrb[0].mxu0 %v618
        %v710 = vpop.f32.mrb[0].mxu0
        %v711 = vadd.f32 0.0, %v710
        %v712 = vpop.f32.mrb[0].mxu0
        %v713 = vpop.f32.mrb[0].mxu0
        %v714 = vadd.f32 0.0, %v713
        %v715 = vpop.f32.mrb[0].mxu0
        %716 = vmatprep.mubr.bf16.mxu0 0
        %717 = vmatmul.mubr.bf16.gmra.mrb[0].mxu0 %v619
        %v718 = vpop.f32.mrb[0].mxu0
        %v719 = vadd.f32 0.0, %v718
        %v720 = vpop.f32.mrb[0].mxu0
        %v721 = vpop.f32.mrb[0].mxu0
        %v722 = vadd.f32 0.0, %v721
        %v723 = vpop.f32.mrb[0].mxu0
        %724 = vdwg.mxu0
        %v725 = vadd.f32 %v548, %v663
        %v726 = vadd.f32 %v549, %v666
        %v727 = vadd.f32 %v550, %v671
        %v728 = vadd.f32 %v551, %v674
        %v729 = vadd.f32 %v552, %v679
        %v730 = vadd.f32 %v553, %v682
        %v731 = vadd.f32 %v554, %v687
        %v732 = vadd.f32 %v555, %v690
        %v733 = vadd.f32 %v556, %v695
        %v734 = vadd.f32 %v557, %v698
        %v735 = vadd.f32 %v558, %v703
        %v736 = vadd.f32 %v559, %v706
        %v737 = vadd.f32 %v560, %v711
        %v738 = vadd.f32 %v561, %v714
        %v739 = vadd.f32 %v562, %v719
        %v740 = vadd.f32 %v563, %v722
        %741 = vst [vmem:[#allocation2] sm:$0xff] %v725
        %742 = vst [vmem:[#allocation2 + $0x8] sm:$0xff] %v726
        %743 = vst [vmem:[#allocation2 + $0x10] sm:$0xff] %v727
        %744 = vst [vmem:[#allocation2 + $0x18] sm:$0xff] %v728
        %745 = vst [vmem:[#allocation2 + $0x20] sm:$0xff] %v729
        %746 = vst [vmem:[#allocation2 + $0x28] sm:$0xff] %v730
        %747 = vst [vmem:[#allocation2 + $0x30] sm:$0xff] %v731
        %748 = vst [vmem:[#allocation2 + $0x38] sm:$0xff] %v732
        %749 = vst [vmem:[#allocation2 + $0x40] sm:$0xff] %v733
        %750 = vst [vmem:[#allocation2 + $0x48] sm:$0xff] %v734
        %751 = vst [vmem:[#allocation2 + $0x50] sm:$0xff] %v735
        %752 = vst [vmem:[#allocation2 + $0x58] sm:$0xff] %v736
        %753 = vst [vmem:[#allocation2 + $0x60] sm:$0xff] %v737
        %754 = vst [vmem:[#allocation2 + $0x68] sm:$0xff] %v738
        %755 = vst [vmem:[#allocation2 + $0x70] sm:$0xff] %v739
        %756 = vst [vmem:[#allocation2 + $0x78] sm:$0xff] %v740
        // Predicated region
        $region49: #{tpu_custom_call.1} parent=31 // pred_check
          %p757 = pneg %p290
        $region50: #{tpu_custom_call.1} parent=31 // pred_check_branch
          %759 = sbr.rel (%p757) target = $region52
        $region51: #{tpu_custom_call.1} parent=31 // pred_region
          %v760 = vld [vmem:[#allocation2] sm:$0xff]
          %v761 = vld [vmem:[#allocation2 + $0x8] sm:$0xff]
          %v762 = vld [vmem:[#allocation2 + $0x10] sm:$0xff]
          %v763 = vld [vmem:[#allocation2 + $0x18] sm:$0xff]
          %v764 = vld [vmem:[#allocation2 + $0x20] sm:$0xff]
          %v765 = vld [vmem:[#allocation2 + $0x28] sm:$0xff]
          %v766 = vld [vmem:[#allocation2 + $0x30] sm:$0xff]
          %v767 = vld [vmem:[#allocation2 + $0x38] sm:$0xff]
          %v768 = vld [vmem:[#allocation2 + $0x40] sm:$0xff]
          %v769 = vld [vmem:[#allocation2 + $0x48] sm:$0xff]
          %v770 = vld [vmem:[#allocation2 + $0x50] sm:$0xff]
          %v771 = vld [vmem:[#allocation2 + $0x58] sm:$0xff]
          %v772 = vld [vmem:[#allocation2 + $0x60] sm:$0xff]
          %v773 = vld [vmem:[#allocation2 + $0x68] sm:$0xff]
          %v774 = vld [vmem:[#allocation2 + $0x70] sm:$0xff]
          %v775 = vld [vmem:[#allocation2 + $0x78] sm:$0xff]
          %776 = vst [vmem:[%s286] sm:$0xff] %v760
          %777 = vst [vmem:[%s286 + $0x8] sm:$0xff] %v761
          %778 = vst [vmem:[%s286 + $0x10] sm:$0xff] %v762
          %779 = vst [vmem:[%s286 + $0x18] sm:$0xff] %v763
          %780 = vst [vmem:[%s286 + $0x20] sm:$0xff] %v764
          %781 = vst [vmem:[%s286 + $0x28] sm:$0xff] %v765
          %782 = vst [vmem:[%s286 + $0x30] sm:$0xff] %v766
          %783 = vst [vmem:[%s286 + $0x38] sm:$0xff] %v767
          %784 = vst [vmem:[%s286 + $0x40] sm:$0xff] %v768
          %785 = vst [vmem:[%s286 + $0x48] sm:$0xff] %v769
          %786 = vst [vmem:[%s286 + $0x50] sm:$0xff] %v770
          %787 = vst [vmem:[%s286 + $0x58] sm:$0xff] %v771
          %788 = vst [vmem:[%s286 + $0x60] sm:$0xff] %v772
          %789 = vst [vmem:[%s286 + $0x68] sm:$0xff] %v773
          %790 = vst [vmem:[%s286 + $0x70] sm:$0xff] %v774
          %791 = vst [vmem:[%s286 + $0x78] sm:$0xff] %v775
        $region52: #{tpu_custom_call.1} parent=31 // pred_fallthru
          _
        %s792 = sand.u32 %s143, 1
        %s793 = scalar_lea.sflag [#allocation5], %s792
        %s794 = sand.u32 %s143, 1
        %s795 = smul.addr %s794, 128
        %s796 = scalar_lea.vmem [#allocation9], %s795
        // Predicated region
        $region53: #{tpu_custom_call.1} parent=31 // pred_check
          %p797 = pneg %p153
        $region54: #{tpu_custom_call.1} parent=31 // pred_check_branch
          %799 = sbr.rel (%p797) target = $region56
        $region55: #{tpu_custom_call.1} parent=31 // pred_region
          %s800 = smul.u32 16, %s30
          %s802 = ssub.s32 2048, 2048
          %803 = vsyncadd %s793, %s802
          %s804 = sadd.s32 %s31, %s800
          %s805 = smul.addr %s29, 16
          %s806 = sadd.s32 %s804, %s805
          %s807 = smul.addr %s806, 128
          %s808 = scalar_lea.hbm %s3, %s807
          %s809 = sshll.u32 %s796, 4
          %s810 = int_to_ptr.vmem [resolvable:$true] %s809
          %815 = dma.vmem_to_hbm [thread:$0]  %s810, 2048, %s808, %s793, 128, 128, 8
        $region56: #{tpu_custom_call.1} parent=31 // pred_fallthru
          _
      $region32: #{tpu_custom_call.1} parent=5 // pred_fallthru
        _
      %p816 = scmp.le.s32.totalorder 2, %s18
      // Predicated region
      $region57: #{tpu_custom_call.1} parent=5 // pred_check
        %p817 = pneg %p816
      $region58: #{tpu_custom_call.1} parent=5 // pred_check_branch
        %819 = sbr.rel (%p817) target = $region60
      $region59: #{tpu_custom_call.1} parent=5 // pred_region
        %s820 = ssub.s32 %s18, 2
        // Predicated region
        $region61: #{tpu_custom_call.1} parent=59 // pred_check
          %p821 = pneg %p159
        $region62: #{tpu_custom_call.1} parent=59 // pred_check_branch
          %823 = sbr.rel (%p821) target = $region64
        $region63: #{tpu_custom_call.1} parent=59 // pred_region
          %s824 = sand.u32 %s144, 1
          %s825 = scalar_lea.sflag [#allocation5], %s824
          %s826 = sand.u32 %s144, 1
          %s827 = smul.addr %s826, 128
          %s828 = scalar_lea.vmem [#allocation9], %s827
          %829 = dma.done %s825, 2048
        $region64: #{tpu_custom_call.1} parent=59 // pred_fallthru
          _
      $region60: #{tpu_custom_call.1} parent=5 // pred_fallthru
        _
    $region6: #{tpu_custom_call.1} parent=1 // loop_footer
      %s22 = sadd.s32 1, %s18
    $region7: #{tpu_custom_call.1} parent=1 // loop_footer_branch
      %17 = sbr.rel target = $region3
    $region8: #{tpu_custom_call.1} parent=1 // loop_exit
      _
    %830 = vsyncpa [#allocation4], 1
    %s831 = scalar_lea.sflag [#allocation4], 1
    %832 = vsyncpa %s831, 1
    %833 = vsyncpa [#allocation7], 1
    %s834 = scalar_lea.sflag [#allocation7], 1
    %835 = vsyncpa %s834, 1
    %836 = vsyncpa [#allocation5], 1
    %s837 = scalar_lea.sflag [#allocation5], 1
    %838 = vsyncpa %s837, 1

</llo_original>
